<compile_context>
chip_gen: v7x
topology: tpu7x:2x2x1
jax: 0.10.0
libtpu: 0.0.40
codegen_flags: <defaults>
</compile_context>

<pallas_src>
import math

import numpy as np
import jax
import jax.numpy as jnp
from jax.experimental import pallas as pl
from jax.experimental.pallas import tpu as pltpu

# ----- module hyper-parameters (standard PennyLane patch-GAN values) -----
N_QUBITS = 5
N_A_QUBITS = 1
Q_DEPTH = 6
N_GENERATORS = 4
Q_DELTA = 1.0

DIM = 2 ** N_QUBITS                            # 32  (statevector length)
PATCH_SIZE = 2 ** (N_QUBITS - N_A_QUBITS)      # 16  (patch per generator)
IN_FEATURES = PATCH_SIZE * N_GENERATORS        # 64  (post_process input)
HIDDEN = 128
OUT_DIM = 64                                   # 8x8 image, flattened
GROUPW = N_GENERATORS * DIM                    # 128 (lane width of the fused layout)
LN_EPS = 1e-5
NEG_SLOPE = 0.2

assert GROUPW == 128 and HIDDEN == 128 and OUT_DIM <= HIDDEN

# ----- row layout of the f32 parameter slab (qslab) -----
ROW_U = 0                                      # [0,128): block-diag circuit (U_g^T blocks)
ROW_BITS = GROUPW                              # 5 rows: per-wire basis bits, tiled x4 groups
ROW_B1 = ROW_BITS + N_QUBITS                   # Linear1 bias (128)
ROW_GAMMA = ROW_B1 + 1                         # LayerNorm gamma
ROW_BETA = ROW_GAMMA + 1                       # LayerNorm beta
ROW_B2 = ROW_BETA + 1                          # Linear2 bias, zero-padded 64->128
ROW_ST = ROW_B2 + 1                            # 4 rows: group selector (1 on own 32-lane group)
QSLAB_ROWS = ((ROW_ST + N_GENERATORS + 7) // 8) * 8   # pad rows to multiple of 8 -> 144

MAX_TILE_B = 256                               # batch tile (sweepable: 128/256/512)


# =========================== Pallas kernel ===========================

def generator_kernel(x_ref, qslab_ref, wslab_ref, out_ref):
    # ---- RY(noise) encoding of |0...0>, replicated into the 4 groups -> (B, 128) ----
    half = x_ref[...] * 0.5                                   # (B, 5)
    c = jnp.cos(half)                                         # one wide EUP call
    smc = jnp.sin(half) - c                                   # s - c  (blend = c + bit*(s-c))
    bits = qslab_ref[ROW_BITS:ROW_BITS + N_QUBITS, :]         # (5, 128) baked 0/1 rows

    psi0 = None
    for w in range(N_QUBITS):
        amp_w = c[:, w:w + 1] + bits[w:w + 1, :] * smc[:, w:w + 1]   # (B, 128)
        psi0 = amp_w if psi0 is None else psi0 * amp_w

    # ---- all 4 generator circuits with ONE MXU matmul against the block-diag U^T.
    # Kept f32 deliberately (3x bf16-pass penalty on v6e/v7x accepted): probability
    # fidelity matters before the max-normalisation and the MXU is not the bottleneck.
    ubd = qslab_ref[ROW_U:ROW_U + GROUPW, :]                  # (128, 128) f32
    psi = jnp.dot(psi0, ubd, preferred_element_type=jnp.float32)     # (B, 128)
    probs = psi * psi                                         # |amplitude|^2

    # ---- partial measurement: per group keep lanes [0,16), normalise by their max ----
    maxes = jnp.concatenate(
        [jnp.max(probs[:, g * DIM:g * DIM + PATCH_SIZE], axis=-1, keepdims=True)
         for g in range(N_GENERATORS)], axis=-1)              # (B, 4)
    inv = pl.reciprocal(jnp.maximum(maxes, 1e-30), approx=True)      # (B, 4), EUP, guarded
    st = qslab_ref[ROW_ST:ROW_ST + N_GENERATORS, :]           # (4, 128) group selector
    inv_maxcol = jnp.dot(inv, st, preferred_element_type=jnp.float32)  # (B,128) MXU broadcast
    images = probs * inv_maxcol   # lanes j>=16 of each group are junk; w1e has zero rows there

    # ---- post_process: Linear(64,128) -> LayerNorm -> LeakyReLU -> Linear(128,64) -> Tanh ----
    b1 = qslab_ref[ROW_B1:ROW_B1 + 1, :]
    gamma = qslab_ref[ROW_GAMMA:ROW_GAMMA + 1, :]
    beta = qslab_ref[ROW_BETA:ROW_BETA + 1, :]
    b2 = qslab_ref[ROW_B2:ROW_B2 + 1, :]
    w1e = wslab_ref[0:HIDDEN, :]                              # (128, 128) bf16 (expanded w1)
    w2p = wslab_ref[HIDDEN:2 * HIDDEN, :]                     # (128, 128) bf16 (padded w2)

    h = jnp.dot(images.astype(jnp.bfloat16), w1e,
                preferred_element_type=jnp.float32) + b1      # (B, 128)
    mu = jnp.mean(h, axis=-1, keepdims=True)                  # fused LN stats:
    ms = jnp.mean(h * h, axis=-1, keepdims=True)              #   var = E[h^2] - mu^2
    h = (h - mu) * jax.lax.rsqrt(ms - mu * mu + LN_EPS) * gamma + beta
    h = jnp.maximum(h, NEG_SLOPE * h)                         # LeakyReLU(0.2)
    h = jnp.dot(h.astype(jnp.bfloat16), w2p,
                preferred_element_type=jnp.float32) + b2      # (B, 128), cols>=64 exactly 0
    out_ref[...] = jnp.tanh(h)                                # lane-dense full-128 store


def _round_up(n, m):
    return ((n + m - 1) // m) * m


@jax.jit
def generator_forward(x, qslab, wslab):
    B = x.shape[0]
    tile_b = min(MAX_TILE_B, _round_up(max(B, 1), 8))
    bp = _round_up(B, tile_b)
    if bp != B:
        x = jnp.pad(x, ((0, bp - B), (0, 0)))                 # zero-noise pad rows are benign

    out = pl.pallas_call(
        generator_kernel,
        out_shape=jax.ShapeDtypeStruct((bp, GROUPW), jnp.float32),
        grid_spec=pltpu.PrefetchScalarGridSpec(
            num_scalar_prefetch=0,
            grid=(bp // tile_b,),
            in_specs=[
                pl.BlockSpec((tile_b, N_QUBITS), lambda i: (i, 0)),
                pl.BlockSpec((QSLAB_ROWS, GROUPW), lambda i: (0, 0)),   # VMEM-resident
                pl.BlockSpec((2 * HIDDEN, GROUPW), lambda i: (0, 0)),   # VMEM-resident
            ],
            out_specs=pl.BlockSpec((tile_b, GROUPW), lambda i: (i, 0)),
        ),
        compiler_params=pltpu.CompilerParams(
            dimension_semantics=("parallel",)),                # megacore split on v7x
    )(x, qslab, wslab)
    return out[:B, :OUT_DIM]                                   # drop pad rows + zero columns


# ======================= host-side parameter prep =======================

def _build_circuit_unitaries(q_params):
    """Per-generator 32x32 real unitary for the RY+CZ patch-GAN circuit
    (RY layer on all wires, then CZ chain, repeated q_depth times)."""
    q = np.asarray(q_params, dtype=np.float64).reshape(N_GENERATORS, Q_DEPTH, N_QUBITS)
    k = np.arange(DIM)
    bits = [((k >> (N_QUBITS - 1 - w)) & 1) for w in range(N_QUBITS)]
    mats = []
    for g in range(N_GENERATORS):
        U = np.eye(DIM)
        for d in range(Q_DEPTH):
            for w in range(N_QUBITS):
                c, s = np.cos(q[g, d, w] / 2.0), np.sin(q[g, d, w] / 2.0)
                ry = np.array([[c, -s], [s, c]])
                G = np.kron(np.kron(np.eye(2 ** w), ry), np.eye(2 ** (N_QUBITS - 1 - w)))
                U = G @ U
            for w in range(N_QUBITS - 1):
                cz = np.where((bits[w] == 1) & (bits[w + 1] == 1), -1.0, 1.0)
                U = cz[:, None] * U
        mats.append(U)
    return np.stack(mats).astype(np.float32)                   # (NG, 32, 32)


def init_params(key):
    kq, kw1, kb1, kw2, kb2 = jax.random.split(key, 5)
    q_params = Q_DELTA * (2.0 * jax.random.uniform(
        kq, (N_GENERATORS, Q_DEPTH, N_QUBITS), dtype=jnp.float32) - 1.0)
    lim1 = 1.0 / math.sqrt(IN_FEATURES)
    lim2 = 1.0 / math.sqrt(HIDDEN)
    return {
        "q_params": q_params,
        "w1": jax.random.uniform(kw1, (HIDDEN, IN_FEATURES), minval=-lim1, maxval=lim1),
        "b1": jax.random.uniform(kb1, (HIDDEN,), minval=-lim1, maxval=lim1),
        "gamma": jnp.ones((HIDDEN,), jnp.float32),
        "beta": jnp.zeros((HIDDEN,), jnp.float32),
        "w2": jax.random.uniform(kw2, (OUT_DIM, HIDDEN), minval=-lim2, maxval=lim2),
        "b2": jax.random.uniform(kb2, (OUT_DIM,), minval=-lim2, maxval=lim2),
    }


def pack_params(params):
    """Pack everything into one f32 slab + one bf16 weight slab (3 input DMAs total)."""
    U = _build_circuit_unitaries(params["q_params"])            # (NG, 32, 32)

    # block-diagonal (128,128) of the transposed per-generator unitaries
    ubd = np.zeros((GROUPW, GROUPW), np.float32)
    for g in range(N_GENERATORS):
        ubd[g * DIM:(g + 1) * DIM, g * DIM:(g + 1) * DIM] = U[g].T

    # per-wire basis bits, tiled across the 4 groups (wire 0 = MSB of basis index)
    kidx = np.arange(GROUPW) % DIM
    bits = np.stack([((kidx >> (N_QUBITS - 1 - w)) & 1).astype(np.float32)
                     for w in range(N_QUBITS)], axis=0)          # (5, 128)

    # group-broadcast selector rows: st[g, c] = 1 iff c // 32 == g
    st = np.zeros((N_GENERATORS, GROUPW), np.float32)
    for g in range(N_GENERATORS):
        st[g, g * DIM:(g + 1) * DIM] = 1.0

    tail = np.zeros((QSLAB_ROWS - GROUPW, GROUPW), np.float32)
    tail[ROW_BITS - GROUPW:ROW_BITS - GROUPW + N_QUBITS, :] = bits
    tail[ROW_B1 - GROUPW, :HIDDEN] = np.asarray(params["b1"], np.float32)
    tail[ROW_GAMMA - GROUPW, :HIDDEN] = np.asarray(params["gamma"], np.float32)
    tail[ROW_BETA - GROUPW, :HIDDEN] = np.asarray(params["beta"], np.float32)
    tail[ROW_B2 - GROUPW, :OUT_DIM] = np.asarray(params["b2"], np.float32)
    tail[ROW_ST - GROUPW:ROW_ST - GROUPW + N_GENERATORS, :] = st

    qslab = jnp.asarray(np.concatenate([ubd, tail], axis=0))     # (144, 128) f32

    w1 = np.asarray(params["w1"], np.float32)                    # (128, 64) torch (out,in)
    w2 = np.asarray(params["w2"], np.float32)                    # (64, 128)
    # expanded first-layer weight: lane g*32+j (j<16) -> input feature g*16+j; zero rows else
    w1e = np.zeros((GROUPW, HIDDEN), np.float32)
    for g in range(N_GENERATORS):
        w1e[g * DIM:g * DIM + PATCH_SIZE, :] = w1[:, g * PATCH_SIZE:(g + 1) * PATCH_SIZE].T
    # second-layer weight, output columns padded 64 -> 128 with zeros
    w2p = np.zeros((HIDDEN, HIDDEN), np.float32)
    w2p[:, :OUT_DIM] = w2.T
    wslab = jnp.asarray(np.concatenate([w1e, w2p], axis=0), dtype=jnp.bfloat16)  # (256,128)
    return qslab, wslab


# =========================== pure-JAX reference ===========================

def reference_forward(x, params):
    """Mirrors the PyTorch forward (eval mode) with the standard partial_measure."""
    U = jnp.asarray(_build_circuit_unitaries(params["q_params"]))
    B = x.shape[0]
    k = np.arange(DIM)
    psi0 = jnp.ones((B, DIM), jnp.float32)
    for w in range(N_QUBITS):
        bit = jnp.asarray((k >> (N_QUBITS - 1 - w)) & 1, jnp.float32)
        half = x[:, w:w + 1] * 0.5
        psi0 = psi0 * (jnp.cos(half) * (1.0 - bit) + jnp.sin(half) * bit)
    patches = []
    for g in range(N_GENERATORS):
        psi = psi0 @ U[g].T
        probs = psi * psi
        given0 = probs[:, :PATCH_SIZE] / jnp.sum(probs, axis=-1, keepdims=True)
        patches.append(given0 / jnp.max(given0, axis=-1, keepdims=True))
    images = jnp.concatenate(patches, axis=-1)                   # (B, 64)
    h = images @ params["w1"].T + params["b1"]
    mu = jnp.mean(h, axis=-1, keepdims=True)
    var = jnp.mean((h - mu) ** 2, axis=-1, keepdims=True)
    h = (h - mu) / jnp.sqrt(var + LN_EPS) * params["gamma"] + params["beta"]
    h = jnp.where(h >= 0, h, NEG_SLOPE * h)
    h = h @ params["w2"].T + params["b2"]
    return jnp.tanh(h).reshape(B, 8, 8).reshape(B, -1)


if __name__ == "__main__":
    key = jax.random.PRNGKey(0)
    pkey, xkey = jax.random.split(key)
    params = init_params(pkey)
    qslab, wslab = pack_params(params)

    B = 2
    # noise in [0, pi/2), as in the quantum-GAN training loop
    x = jax.random.uniform(xkey, (B, N_QUBITS), dtype=jnp.float32) * (math.pi / 2.0)

    out = generator_forward(x, qslab, wslab)
    out = jax.block_until_ready(out)

    assert out.shape == (B, OUT_DIM), out.shape
    assert bool(jnp.all(jnp.isfinite(out)))

    ref = reference_forward(x, params)
    err = float(jnp.max(jnp.abs(out - ref)))
    assert bool(jnp.allclose(out, ref, atol=5e-2)), err

    print("KERNEL_OK")
</pallas_src>

<mosaic_0001>
module attributes {stable_mosaic.version = 11 : i64} {
  func.func @generator_kernel(%arg0: i32, %arg1: memref<8x5xf32, #tpu.memory_space<vmem>>, %arg2: memref<144x128xf32, #tpu.memory_space<vmem>>, %arg3: memref<256x128xbf16, #tpu.memory_space<vmem>>, %arg4: memref<8x128xf32, #tpu.memory_space<vmem>>) attributes {dimension_semantics = [#tpu.dimension_semantics<parallel>], iteration_bounds = array<i64: 1>, scalar_prefetch = 0 : i64, scratch_operands = 0 : i64, tpu.core_type = #tpu.core_type<tc>, window_params = [{transform_indices = @transform_0, window_bounds = array<i64: 8, 5>}, {pipeline_mode = #tpu.pipeline_mode<synchronous>, transform_indices = @transform_1, window_bounds = array<i64: 144, 128>}, {pipeline_mode = #tpu.pipeline_mode<synchronous>, transform_indices = @transform_2, window_bounds = array<i64: 256, 128>}, {transform_indices = @transform_3, window_bounds = array<i64: 8, 128>}]} {
    %c0 = arith.constant 0 : index
    %c0_0 = arith.constant 0 : index
    %0 = vector.load %arg1[%c0, %c0_0] : memref<8x5xf32, #tpu.memory_space<vmem>>, vector<8x5xf32>
    %cst = arith.constant 5.000000e-01 : f32
    %1 = vector.broadcast %cst : f32 to vector<8x5xf32>
    %2 = arith.mulf %0, %1 : vector<8x5xf32>
    %3 = math.cos %2 : vector<8x5xf32>
    %4 = math.sin %2 : vector<8x5xf32>
    %5 = arith.subf %4, %3 : vector<8x5xf32>
    %c128 = arith.constant 128 : index
    %c0_1 = arith.constant 0 : index
    %6 = vector.load %arg2[%c128, %c0_1] : memref<144x128xf32, #tpu.memory_space<vmem>>, vector<5x128xf32>
    %7 = vector.extract_strided_slice %3 {offsets = [0, 0], sizes = [8, 1], strides = [1, 1]} : vector<8x5xf32> to vector<8x1xf32>
    %8 = vector.extract_strided_slice %6 {offsets = [0, 0], sizes = [1, 128], strides = [1, 1]} : vector<5x128xf32> to vector<1x128xf32>
    %9 = vector.extract_strided_slice %5 {offsets = [0, 0], sizes = [8, 1], strides = [1, 1]} : vector<8x5xf32> to vector<8x1xf32>
    %10 = vector.broadcast %8 : vector<1x128xf32> to vector<8x128xf32>
    %11 = vector.broadcast %9 : vector<8x1xf32> to vector<8x128xf32>
    %12 = arith.mulf %10, %11 : vector<8x128xf32>
    %13 = vector.broadcast %7 : vector<8x1xf32> to vector<8x128xf32>
    %14 = arith.addf %13, %12 : vector<8x128xf32>
    %15 = vector.extract_strided_slice %3 {offsets = [0, 1], sizes = [8, 1], strides = [1, 1]} : vector<8x5xf32> to vector<8x1xf32>
    %16 = vector.extract_strided_slice %6 {offsets = [1, 0], sizes = [1, 128], strides = [1, 1]} : vector<5x128xf32> to vector<1x128xf32>
    %17 = vector.extract_strided_slice %5 {offsets = [0, 1], sizes = [8, 1], strides = [1, 1]} : vector<8x5xf32> to vector<8x1xf32>
    %18 = vector.broadcast %16 : vector<1x128xf32> to vector<8x128xf32>
    %19 = vector.broadcast %17 : vector<8x1xf32> to vector<8x128xf32>
    %20 = arith.mulf %18, %19 : vector<8x128xf32>
    %21 = vector.broadcast %15 : vector<8x1xf32> to vector<8x128xf32>
    %22 = arith.addf %21, %20 : vector<8x128xf32>
    %23 = arith.mulf %14, %22 : vector<8x128xf32>
    %24 = vector.extract_strided_slice %3 {offsets = [0, 2], sizes = [8, 1], strides = [1, 1]} : vector<8x5xf32> to vector<8x1xf32>
    %25 = vector.extract_strided_slice %6 {offsets = [2, 0], sizes = [1, 128], strides = [1, 1]} : vector<5x128xf32> to vector<1x128xf32>
    %26 = vector.extract_strided_slice %5 {offsets = [0, 2], sizes = [8, 1], strides = [1, 1]} : vector<8x5xf32> to vector<8x1xf32>
    %27 = vector.broadcast %25 : vector<1x128xf32> to vector<8x128xf32>
    %28 = vector.broadcast %26 : vector<8x1xf32> to vector<8x128xf32>
    %29 = arith.mulf %27, %28 : vector<8x128xf32>
    %30 = vector.broadcast %24 : vector<8x1xf32> to vector<8x128xf32>
    %31 = arith.addf %30, %29 : vector<8x128xf32>
    %32 = arith.mulf %23, %31 : vector<8x128xf32>
    %33 = vector.extract_strided_slice %3 {offsets = [0, 3], sizes = [8, 1], strides = [1, 1]} : vector<8x5xf32> to vector<8x1xf32>
    %34 = vector.extract_strided_slice %6 {offsets = [3, 0], sizes = [1, 128], strides = [1, 1]} : vector<5x128xf32> to vector<1x128xf32>
    %35 = vector.extract_strided_slice %5 {offsets = [0, 3], sizes = [8, 1], strides = [1, 1]} : vector<8x5xf32> to vector<8x1xf32>
    %36 = vector.broadcast %34 : vector<1x128xf32> to vector<8x128xf32>
    %37 = vector.broadcast %35 : vector<8x1xf32> to vector<8x128xf32>
    %38 = arith.mulf %36, %37 : vector<8x128xf32>
    %39 = vector.broadcast %33 : vector<8x1xf32> to vector<8x128xf32>
    %40 = arith.addf %39, %38 : vector<8x128xf32>
    %41 = arith.mulf %32, %40 : vector<8x128xf32>
    %42 = vector.extract_strided_slice %3 {offsets = [0, 4], sizes = [8, 1], strides = [1, 1]} : vector<8x5xf32> to vector<8x1xf32>
    %43 = vector.extract_strided_slice %6 {offsets = [4, 0], sizes = [1, 128], strides = [1, 1]} : vector<5x128xf32> to vector<1x128xf32>
    %44 = vector.extract_strided_slice %5 {offsets = [0, 4], sizes = [8, 1], strides = [1, 1]} : vector<8x5xf32> to vector<8x1xf32>
    %45 = vector.broadcast %43 : vector<1x128xf32> to vector<8x128xf32>
    %46 = vector.broadcast %44 : vector<8x1xf32> to vector<8x128xf32>
    %47 = arith.mulf %45, %46 : vector<8x128xf32>
    %48 = vector.broadcast %42 : vector<8x1xf32> to vector<8x128xf32>
    %49 = arith.addf %48, %47 : vector<8x128xf32>
    %50 = arith.mulf %41, %49 : vector<8x128xf32>
    %c0_2 = arith.constant 0 : index
    %c0_3 = arith.constant 0 : index
    %51 = vector.load %arg2[%c0_2, %c0_3] : memref<144x128xf32, #tpu.memory_space<vmem>>, vector<128x128xf32>
    %cst_4 = arith.constant dense<0.000000e+00> : vector<8x128xf32>
    %52 = tpu.matmul %50, %51, %cst_4 {dimension_numbers = #tpu.dot_dimension_numbers<[1], [0], [0], [1], [0, 0, 1, 1], [], []>} : vector<8x128xf32>, vector<128x128xf32>, vector<8x128xf32> -> vector<8x128xf32>
    %53 = arith.mulf %52, %52 : vector<8x128xf32>
    %54 = vector.extract_strided_slice %53 {offsets = [0, 0], sizes = [8, 16], strides = [1, 1]} : vector<8x128xf32> to vector<8x16xf32>
    %cst_5 = arith.constant dense<0xFF800000> : vector<8xf32>
    %55 = vector.multi_reduction <maximumf>, %54, %cst_5 [1] : vector<8x16xf32> to vector<8xf32>
    %56 = vector.shape_cast %55 : vector<8xf32> to vector<8x1xf32>
    %57 = vector.extract_strided_slice %53 {offsets = [0, 32], sizes = [8, 16], strides = [1, 1]} : vector<8x128xf32> to vector<8x16xf32>
    %cst_6 = arith.constant dense<0xFF800000> : vector<8xf32>
    %58 = vector.multi_reduction <maximumf>, %57, %cst_6 [1] : vector<8x16xf32> to vector<8xf32>
    %59 = vector.shape_cast %58 : vector<8xf32> to vector<8x1xf32>
    %60 = vector.extract_strided_slice %53 {offsets = [0, 64], sizes = [8, 16], strides = [1, 1]} : vector<8x128xf32> to vector<8x16xf32>
    %cst_7 = arith.constant dense<0xFF800000> : vector<8xf32>
    %61 = vector.multi_reduction <maximumf>, %60, %cst_7 [1] : vector<8x16xf32> to vector<8xf32>
    %62 = vector.shape_cast %61 : vector<8xf32> to vector<8x1xf32>
    %63 = vector.extract_strided_slice %53 {offsets = [0, 96], sizes = [8, 16], strides = [1, 1]} : vector<8x128xf32> to vector<8x16xf32>
    %cst_8 = arith.constant dense<0xFF800000> : vector<8xf32>
    %64 = vector.multi_reduction <maximumf>, %63, %cst_8 [1] : vector<8x16xf32> to vector<8xf32>
    %65 = vector.shape_cast %64 : vector<8xf32> to vector<8x1xf32>
    %66 = tpu.concatenate %56, %59, %62, %65 in 1 : vector<8x1xf32>, vector<8x1xf32>, vector<8x1xf32>, vector<8x1xf32> -> vector<8x4xf32>
    %cst_9 = arith.constant 1.000000e-30 : f32
    %67 = vector.broadcast %cst_9 : f32 to vector<8x4xf32>
    %68 = arith.maximumf %66, %67 : vector<8x4xf32>
    %69 = tpu.reciprocal %68 {approx = true} : vector<8x4xf32> -> vector<8x4xf32>
    %c137 = arith.constant 137 : index
    %c0_10 = arith.constant 0 : index
    %70 = vector.load %arg2[%c137, %c0_10] : memref<144x128xf32, #tpu.memory_space<vmem>>, vector<4x128xf32>
    %cst_11 = arith.constant dense<0.000000e+00> : vector<8x128xf32>
    %71 = tpu.matmul %69, %70, %cst_11 {dimension_numbers = #tpu.dot_dimension_numbers<[1], [0], [0], [1], [0, 0, 1, 1], [], []>} : vector<8x4xf32>, vector<4x128xf32>, vector<8x128xf32> -> vector<8x128xf32>
    %72 = arith.mulf %53, %71 : vector<8x128xf32>
    %c133 = arith.constant 133 : index
    %c0_12 = arith.constant 0 : index
    %73 = vector.load %arg2[%c133, %c0_12] : memref<144x128xf32, #tpu.memory_space<vmem>>, vector<1x128xf32>
    %c134 = arith.constant 134 : index
    %c0_13 = arith.constant 0 : index
    %74 = vector.load %arg2[%c134, %c0_13] : memref<144x128xf32, #tpu.memory_space<vmem>>, vector<1x128xf32>
    %c135 = arith.constant 135 : index
    %c0_14 = arith.constant 0 : index
    %75 = vector.load %arg2[%c135, %c0_14] : memref<144x128xf32, #tpu.memory_space<vmem>>, vector<1x128xf32>
    %c136 = arith.constant 136 : index
    %c0_15 = arith.constant 0 : index
    %76 = vector.load %arg2[%c136, %c0_15] : memref<144x128xf32, #tpu.memory_space<vmem>>, vector<1x128xf32>
    %c0_16 = arith.constant 0 : index
    %c0_17 = arith.constant 0 : index
    %77 = vector.load %arg3[%c0_16, %c0_17] : memref<256x128xbf16, #tpu.memory_space<vmem>>, vector<128x128xbf16>
    %c128_18 = arith.constant 128 : index
    %c0_19 = arith.constant 0 : index
    %78 = vector.load %arg3[%c128_18, %c0_19] : memref<256x128xbf16, #tpu.memory_space<vmem>>, vector<128x128xbf16>
    %79 = arith.truncf %72 : vector<8x128xf32> to vector<8x128xbf16>
    %cst_20 = arith.constant dense<0.000000e+00> : vector<8x128xf32>
    %80 = tpu.matmul %79, %77, %cst_20 {dimension_numbers = #tpu.dot_dimension_numbers<[1], [0], [0], [1], [0, 0, 1, 1], [], []>} : vector<8x128xbf16>, vector<128x128xbf16>, vector<8x128xf32> -> vector<8x128xf32>
    %81 = vector.broadcast %73 : vector<1x128xf32> to vector<8x128xf32>
    %82 = arith.addf %80, %81 : vector<8x128xf32>
    %cst_21 = arith.constant dense<0.000000e+00> : vector<8xf32>
    %83 = vector.multi_reduction <add>, %82, %cst_21 [1] : vector<8x128xf32> to vector<8xf32>
    %84 = vector.shape_cast %83 : vector<8xf32> to vector<8x1xf32>
    %cst_22 = arith.constant 1.280000e+02 : f32
    %85 = vector.broadcast %cst_22 : f32 to vector<8x1xf32>
    %86 = arith.divf %84, %85 : vector<8x1xf32>
    %87 = arith.mulf %82, %82 : vector<8x128xf32>
    %cst_23 = arith.constant dense<0.000000e+00> : vector<8xf32>
    %88 = vector.multi_reduction <add>, %87, %cst_23 [1] : vector<8x128xf32> to vector<8xf32>
    %89 = vector.shape_cast %88 : vector<8xf32> to vector<8x1xf32>
    %cst_24 = arith.constant 1.280000e+02 : f32
    %90 = vector.broadcast %cst_24 : f32 to vector<8x1xf32>
    %91 = arith.divf %89, %90 : vector<8x1xf32>
    %92 = vector.broadcast %86 : vector<8x1xf32> to vector<8x128xf32>
    %93 = arith.subf %82, %92 : vector<8x128xf32>
    %94 = arith.mulf %86, %86 : vector<8x1xf32>
    %95 = arith.subf %91, %94 : vector<8x1xf32>
    %cst_25 = arith.constant 9.99999974E-6 : f32
    %96 = vector.broadcast %cst_25 : f32 to vector<8x1xf32>
    %97 = arith.addf %95, %96 : vector<8x1xf32>
    %98 = math.rsqrt %97 : vector<8x1xf32>
    %99 = vector.broadcast %98 : vector<8x1xf32> to vector<8x128xf32>
    %100 = arith.mulf %93, %99 : vector<8x128xf32>
    %101 = vector.broadcast %74 : vector<1x128xf32> to vector<8x128xf32>
    %102 = arith.mulf %100, %101 : vector<8x128xf32>
    %103 = vector.broadcast %75 : vector<1x128xf32> to vector<8x128xf32>
    %104 = arith.addf %102, %103 : vector<8x128xf32>
    %cst_26 = arith.constant 2.000000e-01 : f32
    %105 = vector.broadcast %cst_26 : f32 to vector<8x128xf32>
    %106 = arith.mulf %105, %104 : vector<8x128xf32>
    %107 = arith.maximumf %104, %106 : vector<8x128xf32>
    %108 = arith.truncf %107 : vector<8x128xf32> to vector<8x128xbf16>
    %cst_27 = arith.constant dense<0.000000e+00> : vector<8x128xf32>
    %109 = tpu.matmul %108, %78, %cst_27 {dimension_numbers = #tpu.dot_dimension_numbers<[1], [0], [0], [1], [0, 0, 1, 1], [], []>} : vector<8x128xbf16>, vector<128x128xbf16>, vector<8x128xf32> -> vector<8x128xf32>
    %110 = vector.broadcast %76 : vector<1x128xf32> to vector<8x128xf32>
    %111 = arith.addf %109, %110 : vector<8x128xf32>
    %112 = math.tanh %111 : vector<8x128xf32>
    %c0_28 = arith.constant 0 : index
    %c0_29 = arith.constant 0 : index
    %113 = vector.load %arg4[%c0_28, %c0_29] : memref<8x128xf32, #tpu.memory_space<vmem>>, vector<8x128xf32>
    tpu.vector_store %arg4[%c0_28, %c0_29], %112 {strides = array<i32>} : memref<8x128xf32, #tpu.memory_space<vmem>>, vector<8x128xf32>,
    return
  }
  func.func @transform_0(%arg0: i32) -> (i32, i32) {
    %c0_i32 = arith.constant 0 : i32
    %c0_i32_0 = arith.constant 0 : i32
    return %arg0, %c0_i32 : i32, i32
  }
  func.func @transform_1(%arg0: i32) -> (i32, i32) {
    %c0_i32 = arith.constant 0 : i32
    %c0_i32_0 = arith.constant 0 : i32
    %c0_i32_1 = arith.constant 0 : i32
    return %c0_i32, %c0_i32_0 : i32, i32
  }
  func.func @transform_2(%arg0: i32) -> (i32, i32) {
    %c0_i32 = arith.constant 0 : i32
    %c0_i32_0 = arith.constant 0 : i32
    %c0_i32_1 = arith.constant 0 : i32
    return %c0_i32, %c0_i32_0 : i32, i32
  }
  func.func @transform_3(%arg0: i32) -> (i32, i32) {
    %c0_i32 = arith.constant 0 : i32
    %c0_i32_0 = arith.constant 0 : i32
    return %arg0, %c0_i32 : i32, i32
  }
}

</mosaic_0001>

<llo_original>
// kernel: generator_forward.1
$region0: #{generator_forward.1}
  #allocation0 [shape = 'u32[]', space=smem, size = 0x4, offset = 0x4, fixed_abs, tag = 'smem constant byte address 0x4 - core index']
  #allocation1 [shape = 'u32[144,128]{1,0:T(1,128)}', space=vmem, size = 0x12000, scoped, tag = 'internal scratch']
  %s0 = inlined_call_operand.vmem [shape: f32[8,5], index: 0, kind: input, shape index: {}]
  %s1 = inlined_call_operand.hbm [shape: f32[144,128], index: 1, kind: input, shape index: {}]
  %s2 = inlined_call_operand.hbm [shape: bf16[256,128], index: 2, kind: input, shape index: {}]
  %s3 = inlined_call_operand.vmem [shape: f32[8,128], index: 3, kind: output, shape index: {}]
  %s4 = sld [smem:[#allocation0]]
  $region30: #{generator_forward.1} parent=0
    _
  %s6 = ssub.s32 1, %s4
  %s7 = scalar_select 0, %s6, %s4
  $region1: #{generator_forward.1} parent=0
    #allocation2 [shape = 'u8[73728]{0}', space=vmem, size = 0x12000, scoped, tag = 'input window, operand 1, single buffered']
    #allocation3 [shape = 's32[1]{0}', space=sflag, size = 0x4, scoped, tag = 'scoped memory for generator_forward.1']
    #allocation4 [shape = 'u8[65536]{0}', space=vmem, size = 0x10000, scoped, tag = 'input window, operand 2, single buffered']
    #allocation5 [shape = 's32[1]{0}', space=sflag, size = 0x4, scoped, tag = 'scoped memory for generator_forward.1']
    %8 = vsyncpa [#allocation3], 0
    %9 = vsyncpa [#allocation5], 0
    // Predicated region
    $region2: #{generator_forward.1} parent=1 // pred_check
      _
    $region3: #{generator_forward.1} parent=1 // pred_check_branch
      %11 = sbr.rel (0) target = $region5
    $region4: #{generator_forward.1} parent=1 // pred_region
      _
    $region5: #{generator_forward.1} parent=1 // pred_fallthru
      _
    // Predicated region
    $region6: #{generator_forward.1} parent=1 // pred_check
      _
    $region7: #{generator_forward.1} parent=1 // pred_check_branch
      %13 = sbr.rel (0) target = $region9
    $region8: #{generator_forward.1} parent=1 // pred_region
      %s15 = ssub.s32 2304, 2304
      %16 = vsyncadd [#allocation3], %s15
      %s17 = sshll.u32 [#allocation2], 4
      %s18 = int_to_ptr.vmem [resolvable:$true] %s17
      %23 = dma.hbm_to_vmem [thread:$0]  %s1, 2304, %s18, [#allocation3], 128, 128, 8
    $region9: #{generator_forward.1} parent=1 // pred_fallthru
      _
    // Predicated region
    $region10: #{generator_forward.1} parent=1 // pred_check
      _
    $region11: #{generator_forward.1} parent=1 // pred_check_branch
      %25 = sbr.rel (0) target = $region13
    $region12: #{generator_forward.1} parent=1 // pred_region
      %s27 = ssub.s32 2048, 2048
      %28 = vsyncadd [#allocation5], %s27
      %s29 = sshll.u32 [#allocation4], 4
      %s30 = int_to_ptr.vmem [resolvable:$true] %s29
      %35 = dma.hbm_to_vmem [thread:$0]  %s2, 2048, %s30, [#allocation5], 64, 64, 4
    $region13: #{generator_forward.1} parent=1 // pred_fallthru
      _
    // Predicated region
    $region14: #{generator_forward.1} parent=1 // pred_check
      _
    $region15: #{generator_forward.1} parent=1 // pred_check_branch
      %37 = sbr.rel (0) target = $region17
    $region16: #{generator_forward.1} parent=1 // pred_region
      %38 = dma.done [#allocation3], 2304
    $region17: #{generator_forward.1} parent=1 // pred_fallthru
      _
    // Predicated region
    $region18: #{generator_forward.1} parent=1 // pred_check
      _
    $region19: #{generator_forward.1} parent=1 // pred_check_branch
      %40 = sbr.rel (0) target = $region21
    $region20: #{generator_forward.1} parent=1 // pred_region
      %41 = dma.done [#allocation5], 2048
    $region21: #{generator_forward.1} parent=1 // pred_fallthru
      _
    %v43 = vld [vmem:[%s0] sm:$0xff]
    %v44 = vmul.f32 %v43, 0.5
    %v45 = vand.u32 2147483647, %v44
    %vm46 = vcmp.le.f32.partialorder %v45, 0.7853982
    %vm47 = vcmp.lt.s32.totalorder %v44, 0
    %v48 = vand.u32 %v44, 2139095040
    %v49 = vshrl.u32 %v48, 23
    %v50 = vsub.s32 %v49, 127
    %v51 = vand.u32 2147483647, %v44
    %v52 = vand.u32 %v51, 8388607
    %v53 = vor.u32 %v52, 8388608
    %v54 = vsub.s32 0, %v53
    %v55 = vadd.s32 %v50, 1
    %vm56 = vcmp.gt.s32.totalorder %v55, 0
    %v57 = vsel %vm56, %v55, 0
    %v58 = vshrl.u32 %v57, 5
    %v59 = vand.u32 %v57, 31
    %v60 = vsub.s32 32, %v59
    %v61 = vshrl.u32 683565275, %v60
    %v62 = vshll.u32 683565275, %v59
    %v63 = vshrl.u32 2475754826, %v60
    %v64 = vor.u32 %v62, %v63
    %v65 = vshll.u32 2475754826, %v59
    %v66 = vshrl.u32 2131351028, %v60
    %v67 = vor.u32 %v65, %v66
    %v68 = vshll.u32 2131351028, %v59
    %v69 = vshrl.u32 2102212464, %v60
    %v70 = vor.u32 %v68, %v69
    %v71 = vshll.u32 2102212464, %v59
    %v72 = vshrl.u32 920167782, %v60
    %v73 = vor.u32 %v71, %v72
    %v74 = vshll.u32 920167782, %v59
    %v75 = vshrl.u32 1326507024, %v60
    %v76 = vor.u32 %v74, %v75
    %vm77 = vcmp.lt.s32.totalorder %v58, 1
    %vm78 = vcmp.lt.s32.totalorder %v58, 2
    %vm79 = vcmp.lt.s32.totalorder %v58, 3
    %vm80 = vcmp.lt.s32.totalorder %v58, 4
    %v81 = vsel %vm77, %v61, %v64
    %v82 = vsel %vm80, %v70, 2102212464
    %v83 = vsel %vm79, %v67, %v82
    %v84 = vsel %vm78, %v81, %v83
    %v85 = vsel %vm77, %v64, %v67
    %v86 = vsel %vm80, %v73, 920167782
    %v87 = vsel %vm79, %v70, %v86
    %v88 = vsel %vm78, %v85, %v87
    %v89 = vsel %vm77, %v67, %v70
    %v90 = vsel %vm80, %v76, 1326507024
    %v91 = vsel %vm79, %v73, %v90
    %v92 = vsel %vm78, %v89, %v91
    %v93 = vshll.u32 %v53, 8
    %v94 = vmul.u32.u64.compose %v93, %v92
    %v95 = vextract.low.u32 %v94
    %v96 = vextract.high.u32 %v94
    %v97 = vmul.u32.u64.compose %v93, %v88
    %v98 = vextract.low.u32 %v97
    %v99 = vextract.high.u32 %v97
    %v100 = vmul.u32 %v93, %v84
    %v101 = vadd.s32 %v96, %v98
    %vm102 = vc.u32 %v96, %v98
    %v103 = vadd.s32 %v99, 1
    %v104 = vsel %vm102, %v103, %v99
    %v105 = vadd.s32 %v100, %v104
    %v106 = vadd.s32 %v105, 536870912
    %v107 = vshrl.u32 %v106, 30
    %v108 = vshll.u32 %v107, 30
    %v109 = vsub.s32 %v105, %v108
    %vm110 = vcmp.lt.s32.totalorder %v109, 0
    %v111 = vsub.s32 0, %v109
    %v112 = vsel %vm110, %v111, %v109
    %v113 = vclz %v112
    %v114 = vsub.s32 %v113, 2
    %vm115 = vcmp.gt.s32.totalorder 0, %v114
    %v116 = vsel %vm115, 0, %v114
    %v117 = vsub.s32 32, %v116
    %v118 = vshll.u32 %v109, %v116
    %v119 = vshrl.u32 %v101, %v117
    %v120 = vor.u32 %v118, %v119
    %v121 = vsub.s32 4294967266, %v116
    %v122 = vadd.s32 %v121, 127
    %v123 = vshll.u32 %v122, 23
    %v124 = vor.u32 4788187, %v123
    %v125 = vand.u32 2147483647, %v124
    %v127 = vcvt.s32.f32 %v120
    %v128 = vmul.f32 %v127, %v125
    %v129 = vxor.u32 %v128, 2147483648
    %v130 = vsel %vm47, %v129, %v128
    %v131 = vsub.s32 4, %v107
    %v132 = vsel %vm47, %v131, %v107
    %v133 = vsel %vm46, %v44, %v130
    %v134 = vsel %vm46, 0, %v132
    %v135 = vcosq.f32.pop %v133
    %v136 = vsinq.f32.pop %v133
    %vm137 = vweird.f32 %v44
    %v138 = vand.u32 %v134, 3
    %vm139 = vcmp.lt.s32.totalorder %v138, 2
    %vm140 = vcmp.eq.s32.totalorder %v138, 0
    %v141 = vxor.u32 %v136, 2147483648
    %v142 = vsel %vm140, %v135, %v141
    %vm143 = vcmp.eq.s32.totalorder %v138, 2
    %v144 = vxor.u32 %v135, 2147483648
    %v145 = vsel %vm143, %v144, %v136
    %v146 = vsel %vm139, %v142, %v145
    %v147 = vsel %vm137, nan, %v146
    %v148 = vand.u32 2147483647, %v44
    %vm149 = vcmp.le.f32.partialorder %v148, 0.7853982
    %vm150 = vcmp.lt.s32.totalorder %v44, 0
    %v151 = vand.u32 %v44, 2139095040
    %v152 = vshrl.u32 %v151, 23
    %v153 = vsub.s32 %v152, 127
    %v154 = vand.u32 2147483647, %v44
    %v155 = vand.u32 %v154, 8388607
    %v156 = vor.u32 %v155, 8388608
    %v157 = vsub.s32 0, %v156
    %v158 = vadd.s32 %v153, 1
    %vm159 = vcmp.gt.s32.totalorder %v158, 0
    %v160 = vsel %vm159, %v158, 0
    %v161 = vshrl.u32 %v160, 5
    %v162 = vand.u32 %v160, 31
    %v163 = vsub.s32 32, %v162
    %v164 = vshrl.u32 683565275, %v163
    %v165 = vshll.u32 683565275, %v162
    %v166 = vshrl.u32 2475754826, %v163
    %v167 = vor.u32 %v165, %v166
    %v168 = vshll.u32 2475754826, %v162
    %v169 = vshrl.u32 2131351028, %v163
    %v170 = vor.u32 %v168, %v169
    %v171 = vshll.u32 2131351028, %v162
    %v172 = vshrl.u32 2102212464, %v163
    %v173 = vor.u32 %v171, %v172
    %v174 = vshll.u32 2102212464, %v162
    %v175 = vshrl.u32 920167782, %v163
    %v176 = vor.u32 %v174, %v175
    %v177 = vshll.u32 920167782, %v162
    %v178 = vshrl.u32 1326507024, %v163
    %v179 = vor.u32 %v177, %v178
    %vm180 = vcmp.lt.s32.totalorder %v161, 1
    %vm181 = vcmp.lt.s32.totalorder %v161, 2
    %vm182 = vcmp.lt.s32.totalorder %v161, 3
    %vm183 = vcmp.lt.s32.totalorder %v161, 4
    %v184 = vsel %vm180, %v164, %v167
    %v185 = vsel %vm183, %v173, 2102212464
    %v186 = vsel %vm182, %v170, %v185
    %v187 = vsel %vm181, %v184, %v186
    %v188 = vsel %vm180, %v167, %v170
    %v189 = vsel %vm183, %v176, 920167782
    %v190 = vsel %vm182, %v173, %v189
    %v191 = vsel %vm181, %v188, %v190
    %v192 = vsel %vm180, %v170, %v173
    %v193 = vsel %vm183, %v179, 1326507024
    %v194 = vsel %vm182, %v176, %v193
    %v195 = vsel %vm181, %v192, %v194
    %v196 = vshll.u32 %v156, 8
    %v197 = vmul.u32.u64.compose %v196, %v195
    %v198 = vextract.low.u32 %v197
    %v199 = vextract.high.u32 %v197
    %v200 = vmul.u32.u64.compose %v196, %v191
    %v201 = vextract.low.u32 %v200
    %v202 = vextract.high.u32 %v200
    %v203 = vmul.u32 %v196, %v187
    %v204 = vadd.s32 %v199, %v201
    %vm205 = vc.u32 %v199, %v201
    %v206 = vadd.s32 %v202, 1
    %v207 = vsel %vm205, %v206, %v202
    %v208 = vadd.s32 %v203, %v207
    %v209 = vadd.s32 %v208, 536870912
    %v210 = vshrl.u32 %v209, 30
    %v211 = vshll.u32 %v210, 30
    %v212 = vsub.s32 %v208, %v211
    %vm213 = vcmp.lt.s32.totalorder %v212, 0
    %v214 = vsub.s32 0, %v212
    %v215 = vsel %vm213, %v214, %v212
    %v216 = vclz %v215
    %v217 = vsub.s32 %v216, 2
    %vm218 = vcmp.gt.s32.totalorder 0, %v217
    %v219 = vsel %vm218, 0, %v217
    %v220 = vsub.s32 32, %v219
    %v221 = vshll.u32 %v212, %v219
    %v222 = vshrl.u32 %v204, %v220
    %v223 = vor.u32 %v221, %v222
    %v224 = vsub.s32 4294967266, %v219
    %v225 = vadd.s32 %v224, 127
    %v226 = vshll.u32 %v225, 23
    %v227 = vor.u32 4788187, %v226
    %v228 = vand.u32 2147483647, %v227
    %v230 = vcvt.s32.f32 %v223
    %v231 = vmul.f32 %v230, %v228
    %v232 = vxor.u32 %v231, 2147483648
    %v233 = vsel %vm150, %v232, %v231
    %v234 = vsub.s32 4, %v210
    %v235 = vsel %vm150, %v234, %v210
    %v236 = vsel %vm149, %v44, %v233
    %v237 = vsel %vm149, 0, %v235
    %v238 = vcosq.f32.pop %v236
    %v239 = vsinq.f32.pop %v236
    %vm240 = vweird.f32 %v44
    %v241 = vadd.s32 %v237, 3
    %v242 = vand.u32 %v241, 3
    %vm243 = vcmp.lt.s32.totalorder %v242, 2
    %vm244 = vcmp.eq.s32.totalorder %v242, 0
    %v245 = vxor.u32 %v239, 2147483648
    %v246 = vsel %vm244, %v238, %v245
    %vm247 = vcmp.eq.s32.totalorder %v242, 2
    %v248 = vxor.u32 %v238, 2147483648
    %v249 = vsel %vm247, %v248, %v239
    %v250 = vsel %vm243, %v246, %v249
    %v251 = vsel %vm240, nan, %v250
    %v252 = vsub.f32 %v251, %v147
    %v253 = vld [vmem:[#allocation2 + $0x80] sm:$0x1f]
    %v254 = vlaneseq
    %v255 = vshrl.u32 %v254, 7
    %v256 = vsub.s32 0, %v255
    %v257 = vrot.slane %v253, %v256
    %259 = vset.pattern.permute.xlu0 0
    %260 = vperm.xlu0 %259, %v252
    %v261 = vpop.permute.xlu0 %260
    %v263 = vmul.f32 %v257, %v261
    %265 = vset.pattern.permute.xlu0 0
    %266 = vperm.xlu0 %265, %v147
    %v267 = vpop.permute.xlu0 %266
    %v269 = vadd.f32 %v267, %v263
    %v270 = vlaneseq
    %v271 = vshrl.u32 %v270, 7
    %v272 = vsub.s32 1, %v271
    %v273 = vrot.slane %v253, %v272
    %274 = vset.pattern.permute.xlu0 1
    %275 = vperm.xlu0 %274, %v252
    %v276 = vpop.permute.xlu0 %275
    %v278 = vmul.f32 %v273, %v276
    %279 = vset.pattern.permute.xlu0 1
    %280 = vperm.xlu0 %279, %v147
    %v281 = vpop.permute.xlu0 %280
    %v283 = vadd.f32 %v281, %v278
    %v284 = vmul.f32 %v269, %v283
    %v285 = vlaneseq
    %v286 = vshrl.u32 %v285, 7
    %v287 = vsub.s32 2, %v286
    %v288 = vrot.slane %v253, %v287
    %289 = vset.pattern.permute.xlu0 2
    %290 = vperm.xlu0 %289, %v252
    %v291 = vpop.permute.xlu0 %290
    %v293 = vmul.f32 %v288, %v291
    %294 = vset.pattern.permute.xlu0 2
    %295 = vperm.xlu0 %294, %v147
    %v296 = vpop.permute.xlu0 %295
    %v298 = vadd.f32 %v296, %v293
    %v299 = vmul.f32 %v284, %v298
    %v300 = vlaneseq
    %v301 = vshrl.u32 %v300, 7
    %v302 = vsub.s32 3, %v301
    %v303 = vrot.slane %v253, %v302
    %304 = vset.pattern.permute.xlu0 3
    %305 = vperm.xlu0 %304, %v252
    %v306 = vpop.permute.xlu0 %305
    %v308 = vmul.f32 %v303, %v306
    %309 = vset.pattern.permute.xlu0 3
    %310 = vperm.xlu0 %309, %v147
    %v311 = vpop.permute.xlu0 %310
    %v313 = vadd.f32 %v311, %v308
    %v314 = vmul.f32 %v299, %v313
    %v315 = vlaneseq
    %v316 = vshrl.u32 %v315, 7
    %v317 = vsub.s32 4, %v316
    %v318 = vrot.slane %v253, %v317
    %319 = vset.pattern.permute.xlu0 4
    %320 = vperm.xlu0 %319, %v252
    %v321 = vpop.permute.xlu0 %320
    %v323 = vmul.f32 %v318, %v321
    %324 = vset.pattern.permute.xlu0 4
    %325 = vperm.xlu0 %324, %v147
    %v326 = vpop.permute.xlu0 %325
    %v328 = vadd.f32 %v326, %v323
    %v329 = vmul.f32 %v314, %v328
    %v330 = vld [vmem:[#allocation2] sm:$0xff]
    %v331 = vld [vmem:[#allocation2 + $0x8] sm:$0xff]
    %v332 = vld [vmem:[#allocation2 + $0x10] sm:$0xff]
    %v333 = vld [vmem:[#allocation2 + $0x18] sm:$0xff]
    %v334 = vld [vmem:[#allocation2 + $0x20] sm:$0xff]
    %v335 = vld [vmem:[#allocation2 + $0x28] sm:$0xff]
    %v336 = vld [vmem:[#allocation2 + $0x30] sm:$0xff]
    %v337 = vld [vmem:[#allocation2 + $0x38] sm:$0xff]
    %v338 = vld [vmem:[#allocation2 + $0x40] sm:$0xff]
    %v339 = vld [vmem:[#allocation2 + $0x48] sm:$0xff]
    %v340 = vld [vmem:[#allocation2 + $0x50] sm:$0xff]
    %v341 = vld [vmem:[#allocation2 + $0x58] sm:$0xff]
    %v342 = vld [vmem:[#allocation2 + $0x60] sm:$0xff]
    %v343 = vld [vmem:[#allocation2 + $0x68] sm:$0xff]
    %v344 = vld [vmem:[#allocation2 + $0x70] sm:$0xff]
    %v345 = vld [vmem:[#allocation2 + $0x78] sm:$0xff]
    %346 = vmatprep.subr.mxu0 0.0
    %347 = vmatpush1.msra.mxu0 %v330
    %348 = vmatprep.subr.mxu0 0.0
    %349 = vmatpush1.msra.mxu0 %v331
    %350 = vmatprep.subr.mxu0 0.0
    %351 = vmatpush1.msra.mxu0 %v332
    %352 = vmatprep.subr.mxu0 0.0
    %353 = vmatpush1.msra.mxu0 %v333
    %354 = vmatprep.subr.mxu0 0.0
    %355 = vmatpush1.msra.mxu0 %v334
    %356 = vmatprep.subr.mxu0 0.0
    %357 = vmatpush1.msra.mxu0 %v335
    %358 = vmatprep.subr.mxu0 0.0
    %359 = vmatpush1.msra.mxu0 %v336
    %360 = vmatprep.subr.mxu0 0.0
    %361 = vmatpush1.msra.mxu0 %v337
    %362 = vmatprep.subr.mxu0 0.0
    %363 = vmatpush1.msra.mxu0 %v338
    %364 = vmatprep.subr.mxu0 0.0
    %365 = vmatpush1.msra.mxu0 %v339
    %366 = vmatprep.subr.mxu0 0.0
    %367 = vmatpush1.msra.mxu0 %v340
    %368 = vmatprep.subr.mxu0 0.0
    %369 = vmatpush1.msra.mxu0 %v341
    %370 = vmatprep.subr.mxu0 0.0
    %371 = vmatpush1.msra.mxu0 %v342
    %372 = vmatprep.subr.mxu0 0.0
    %373 = vmatpush1.msra.mxu0 %v343
    %374 = vmatprep.subr.mxu0 0.0
    %375 = vmatpush1.msra.mxu0 %v344
    %376 = vmatprep.subr.mxu0 0.0
    %377 = vmatpush1.msra.mxu0 %v345
    %378 = vmatprep.subr.mxu0 0.0
    %379 = vmatpush1.msra.mxu0 0.0
    %380 = vmatprep.subr.mxu0 0.0
    %381 = vmatpush1.msra.mxu0 0.0
    %382 = vmatprep.subr.mxu0 0.0
    %383 = vmatpush1.msra.mxu0 0.0
    %384 = vmatprep.subr.mxu0 0.0
    %385 = vmatpush1.msra.mxu0 0.0
    %386 = vmatprep.subr.mxu0 0.0
    %387 = vmatpush1.msra.mxu0 0.0
    %388 = vmatprep.subr.mxu0 0.0
    %389 = vmatpush1.msra.mxu0 0.0
    %390 = vmatprep.subr.mxu0 0.0
    %391 = vmatpush1.msra.mxu0 0.0
    %392 = vmatprep.subr.mxu0 0.0
    %393 = vmatpush1.msra.mxu0 0.0
    %394 = vmatprep.subr.mxu0 0.0
    %395 = vmatpush1.msra.mxu0 0.0
    %396 = vmatprep.subr.mxu0 0.0
    %397 = vmatpush1.msra.mxu0 0.0
    %398 = vmatprep.subr.mxu0 0.0
    %399 = vmatpush1.msra.mxu0 0.0
    %400 = vmatprep.subr.mxu0 0.0
    %401 = vmatpush1.msra.mxu0 0.0
    %402 = vmatprep.subr.mxu0 0.0
    %403 = vmatpush1.msra.mxu0 0.0
    %404 = vmatprep.subr.mxu0 0.0
    %405 = vmatpush1.msra.mxu0 0.0
    %406 = vmatprep.subr.mxu0 0.0
    %407 = vmatpush1.msra.mxu0 0.0
    %408 = vmatprep.subr.mxu0 0.0
    %409 = vmatpush1.msra.mxu0 0.0
    %410 = vmatprep.mubr.f32.mxu0 0.0
    %411 = vmatmul.mubr.f32.gmra.mrb[0].mxu0 %v329
    %v412 = vpop.f32.mrb[0].mxu0
    %v413 = vadd.f32 0.0, %v412
    %v414 = vpop.f32.mrb[0].mxu0
    %415 = vdwg.mxu0
    %v416 = vmul.f32 %v413, %v413
    %vm417 = vcmask 130048
    %v418 = vsel %vm417, %v416, -inf
    %419 = vmax.xlane.f32.xlu0 %v418
    %v420 = vpop.xlane.xlu0 %419
    %vm421 = vcmask 392448
    %v422 = vsel %vm421, %v416, -inf
    %423 = vmax.xlane.f32.xlu0 %v422
    %v424 = vpop.xlane.xlu0 %423
    %vm425 = vcmask 654848
    %v426 = vsel %vm425, %v416, -inf
    %427 = vmax.xlane.f32.xlu0 %v426
    %v428 = vpop.xlane.xlu0 %427
    %vm429 = vcmask 917248
    %v430 = vsel %vm429, %v416, -inf
    %431 = vmax.xlane.f32.xlu0 %v430
    %v432 = vpop.xlane.xlu0 %431
    %vm433 = vcmask 7168
    %v434 = vsel %vm433, %v420, %v424
    %vm435 = vcmask 15360
    %v436 = vsel %vm435, %v434, %v428
    %vm437 = vcmask 23552
    %v438 = vsel %vm437, %v436, %v432
    %v439 = vmax.f32 %v438, 1e-30
    %v440 = vrcp.pop %v439
    %v441 = vld [vmem:[#allocation2 + $0x89] sm:$0xf]
    %vm442 = vcmask 31744
    %v444 = vsel %vm442, %v440, 0
    %vm446 = vcmask 1043456
    %v448 = vsel %vm446, %v441, 0
    %450 = vmatprep.subr.mxu0 0.0
    %451 = vmatpush1.msra.mxu0 %v448
    %452 = vmatprep.subr.mxu0 0.0
    %453 = vmatpush1.msra.mxu0 0.0
    %454 = vmatprep.subr.mxu0 0.0
    %455 = vmatpush1.msra.mxu0 0.0
    %456 = vmatprep.subr.mxu0 0.0
    %457 = vmatpush1.msra.mxu0 0.0
    %458 = vmatprep.subr.mxu0 0.0
    %459 = vmatpush1.msra.mxu0 0.0
    %460 = vmatprep.subr.mxu0 0.0
    %461 = vmatpush1.msra.mxu0 0.0
    %462 = vmatprep.subr.mxu0 0.0
    %463 = vmatpush1.msra.mxu0 0.0
    %464 = vmatprep.subr.mxu0 0.0
    %465 = vmatpush1.msra.mxu0 0.0
    %466 = vmatprep.subr.mxu0 0.0
    %467 = vmatpush1.msra.mxu0 0.0
    %468 = vmatprep.subr.mxu0 0.0
    %469 = vmatpush1.msra.mxu0 0.0
    %470 = vmatprep.subr.mxu0 0.0
    %471 = vmatpush1.msra.mxu0 0.0
    %472 = vmatprep.subr.mxu0 0.0
    %473 = vmatpush1.msra.mxu0 0.0
    %474 = vmatprep.subr.mxu0 0.0
    %475 = vmatpush1.msra.mxu0 0.0
    %476 = vmatprep.subr.mxu0 0.0
    %477 = vmatpush1.msra.mxu0 0.0
    %478 = vmatprep.subr.mxu0 0.0
    %479 = vmatpush1.msra.mxu0 0.0
    %480 = vmatprep.subr.mxu0 0.0
    %481 = vmatpush1.msra.mxu0 0.0
    %482 = vmatprep.subr.mxu0 0.0
    %483 = vmatpush1.msra.mxu0 0.0
    %484 = vmatprep.subr.mxu0 0.0
    %485 = vmatpush1.msra.mxu0 0.0
    %486 = vmatprep.subr.mxu0 0.0
    %487 = vmatpush1.msra.mxu0 0.0
    %488 = vmatprep.subr.mxu0 0.0
    %489 = vmatpush1.msra.mxu0 0.0
    %490 = vmatprep.subr.mxu0 0.0
    %491 = vmatpush1.msra.mxu0 0.0
    %492 = vmatprep.subr.mxu0 0.0
    %493 = vmatpush1.msra.mxu0 0.0
    %494 = vmatprep.subr.mxu0 0.0
    %495 = vmatpush1.msra.mxu0 0.0
    %496 = vmatprep.subr.mxu0 0.0
    %497 = vmatpush1.msra.mxu0 0.0
    %498 = vmatprep.subr.mxu0 0.0
    %499 = vmatpush1.msra.mxu0 0.0
    %500 = vmatprep.subr.mxu0 0.0
    %501 = vmatpush1.msra.mxu0 0.0
    %502 = vmatprep.subr.mxu0 0.0
    %503 = vmatpush1.msra.mxu0 0.0
    %504 = vmatprep.subr.mxu0 0.0
    %505 = vmatpush1.msra.mxu0 0.0
    %506 = vmatprep.subr.mxu0 0.0
    %507 = vmatpush1.msra.mxu0 0.0
    %508 = vmatprep.subr.mxu0 0.0
    %509 = vmatpush1.msra.mxu0 0.0
    %510 = vmatprep.subr.mxu0 0.0
    %511 = vmatpush1.msra.mxu0 0.0
    %512 = vmatprep.subr.mxu0 0.0
    %513 = vmatpush1.msra.mxu0 0.0
    %514 = vmatprep.mubr.f32.mxu0 0.0
    %515 = vmatmul.mubr.f32.gmra.mrb[0].mxu0 %v444
    %v516 = vpop.f32.mrb[0].mxu0
    %v517 = vadd.f32 0.0, %v516
    %v518 = vpop.f32.mrb[0].mxu0
    %519 = vdwg.mxu0
    %v520 = vmul.f32 %v416, %v517
    %v521 = vld [vmem:[#allocation2 + $0x85] sm:$0x1]
    %v522 = vld [vmem:[#allocation2 + $0x86] sm:$0x1]
    %v523 = vld [vmem:[#allocation2 + $0x87] sm:$0x1]
    %v524 = vld [vmem:[#allocation2 + $0x88] sm:$0x1]
    %v525 = vld [vmem:[#allocation4] sm:$0xf]
    %v526 = vld [vmem:[#allocation4 + $0x4] sm:$0xf]
    %v527 = vld [vmem:[#allocation4 + $0x8] sm:$0xf]
    %v528 = vld [vmem:[#allocation4 + $0xc] sm:$0xf]
    %v529 = vld [vmem:[#allocation4 + $0x10] sm:$0xf]
    %v530 = vld [vmem:[#allocation4 + $0x14] sm:$0xf]
    %v531 = vld [vmem:[#allocation4 + $0x18] sm:$0xf]
    %v532 = vld [vmem:[#allocation4 + $0x1c] sm:$0xf]
    %v533 = vld [vmem:[#allocation4 + $0x20] sm:$0xf]
    %v534 = vld [vmem:[#allocation4 + $0x24] sm:$0xf]
    %v535 = vld [vmem:[#allocation4 + $0x28] sm:$0xf]
    %v536 = vld [vmem:[#allocation4 + $0x2c] sm:$0xf]
    %v537 = vld [vmem:[#allocation4 + $0x30] sm:$0xf]
    %v538 = vld [vmem:[#allocation4 + $0x34] sm:$0xf]
    %v539 = vld [vmem:[#allocation4 + $0x38] sm:$0xf]
    %v540 = vld [vmem:[#allocation4 + $0x3c] sm:$0xf]
    %v541 = vld [vmem:[#allocation4 + $0x40] sm:$0xf]
    %v542 = vld [vmem:[#allocation4 + $0x44] sm:$0xf]
    %v543 = vld [vmem:[#allocation4 + $0x48] sm:$0xf]
    %v544 = vld [vmem:[#allocation4 + $0x4c] sm:$0xf]
    %v545 = vld [vmem:[#allocation4 + $0x50] sm:$0xf]
    %v546 = vld [vmem:[#allocation4 + $0x54] sm:$0xf]
    %v547 = vld [vmem:[#allocation4 + $0x58] sm:$0xf]
    %v548 = vld [vmem:[#allocation4 + $0x5c] sm:$0xf]
    %v549 = vld [vmem:[#allocation4 + $0x60] sm:$0xf]
    %v550 = vld [vmem:[#allocation4 + $0x64] sm:$0xf]
    %v551 = vld [vmem:[#allocation4 + $0x68] sm:$0xf]
    %v552 = vld [vmem:[#allocation4 + $0x6c] sm:$0xf]
    %v553 = vld [vmem:[#allocation4 + $0x70] sm:$0xf]
    %v554 = vld [vmem:[#allocation4 + $0x74] sm:$0xf]
    %v555 = vld [vmem:[#allocation4 + $0x78] sm:$0xf]
    %v556 = vld [vmem:[#allocation4 + $0x7c] sm:$0xf]
    %v557 = vpack.c.bf16 %v520, %v520
    %v558 = vlaneseq
    %v559 = vshrl.u32 %v558, 7
    %v560 = vsub.s32 0, %v559
    %v561 = vrot.slane %v521, %v560
    %v578 = vunpack.c.l.b16 %v525
    %v579 = vunpack.c.l.b16 %v526
    %v580 = vunpack.c.l.b16 %v527
    %v581 = vunpack.c.l.b16 %v528
    %v582 = vunpack.c.l.b16 %v529
    %v583 = vunpack.c.l.b16 %v530
    %v584 = vunpack.c.l.b16 %v531
    %v585 = vunpack.c.l.b16 %v532
    %v586 = vunpack.c.l.b16 %v533
    %v587 = vunpack.c.l.b16 %v534
    %v588 = vunpack.c.l.b16 %v535
    %v589 = vunpack.c.l.b16 %v536
    %v590 = vunpack.c.l.b16 %v537
    %v591 = vunpack.c.l.b16 %v538
    %v592 = vunpack.c.l.b16 %v539
    %v593 = vunpack.c.l.b16 %v540
    %v594 = vpack.c.b16 %v579, %v578
    %v595 = vpack.c.b16 %v581, %v580
    %v596 = vpack.c.b16 %v583, %v582
    %v597 = vpack.c.b16 %v585, %v584
    %v598 = vpack.c.b16 %v587, %v586
    %v599 = vpack.c.b16 %v589, %v588
    %v600 = vpack.c.b16 %v591, %v590
    %v601 = vpack.c.b16 %v593, %v592
    %610 = vmatprep.subr.bf16.mxu0 0
    %611 = vmatpush1.bf16.msra.mxu0 %v594
    %612 = vmatprep.subr.bf16.mxu0 0
    %613 = vmatpush1.bf16.msra.mxu0 %v595
    %614 = vmatprep.subr.bf16.mxu0 0
    %615 = vmatpush1.bf16.msra.mxu0 %v596
    %616 = vmatprep.subr.bf16.mxu0 0
    %617 = vmatpush1.bf16.msra.mxu0 %v597
    %618 = vmatprep.subr.bf16.mxu0 0
    %619 = vmatpush1.bf16.msra.mxu0 %v598
    %620 = vmatprep.subr.bf16.mxu0 0
    %621 = vmatpush1.bf16.msra.mxu0 %v599
    %622 = vmatprep.subr.bf16.mxu0 0
    %623 = vmatpush1.bf16.msra.mxu0 %v600
    %624 = vmatprep.subr.bf16.mxu0 0
    %625 = vmatpush1.bf16.msra.mxu0 %v601
    %626 = vmatprep.subr.bf16.mxu0 0
    %627 = vmatpush1.bf16.msra.mxu0 0
    %628 = vmatprep.subr.bf16.mxu0 0
    %629 = vmatpush1.bf16.msra.mxu0 0
    %630 = vmatprep.subr.bf16.mxu0 0
    %631 = vmatpush1.bf16.msra.mxu0 0
    %632 = vmatprep.subr.bf16.mxu0 0
    %633 = vmatpush1.bf16.msra.mxu0 0
    %634 = vmatprep.subr.bf16.mxu0 0
    %635 = vmatpush1.bf16.msra.mxu0 0
    %636 = vmatprep.subr.bf16.mxu0 0
    %637 = vmatpush1.bf16.msra.mxu0 0
    %638 = vmatprep.subr.bf16.mxu0 0
    %639 = vmatpush1.bf16.msra.mxu0 0
    %640 = vmatprep.subr.bf16.mxu0 0
    %641 = vmatpush1.bf16.msra.mxu0 0
    %642 = vmatprep.mubr.bf16.mxu0 0
    %643 = vmatmul.mubr.bf16.gmra.mrb[0].mxu0 %v557
    %v644 = vpop.f32.mrb[0].mxu0
    %v645 = vadd.f32 %v561, %v644
    %v646 = vpop.f32.mrb[0].mxu0
    %v647 = vpop.f32.mrb[0].mxu0
    %v648 = vpop.f32.mrb[0].mxu0
    %649 = vdwg.mxu0
    %650 = vadd.xlane.f32.xlu0 %v645
    %v651 = vpop.xlane.xlu0 %650
    %v652 = vrcp.pop 128.0
    %v653 = vmul.f32 %v651, %v652
    %v654 = vmul.f32 %v645, %v645
    %655 = vadd.xlane.f32.xlu0 %v654
    %v656 = vpop.xlane.xlu0 %655
    %v657 = vmul.f32 %v656, %v652
    %v658 = vsub.f32 %v645, %v653
    %v659 = vmul.f32 %v653, %v653
    %v660 = vsub.f32 %v657, %v659
    %v661 = vadd.f32 %v660, 1e-05
    %v662 = vrsqrt.pop %v661
    %v663 = vmul.f32 %v658, %v662
    %v664 = vlaneseq
    %v665 = vshrl.u32 %v664, 7
    %v666 = vsub.s32 0, %v665
    %v667 = vrot.slane %v522, %v666
    %v668 = vmul.f32 %v663, %v667
    %v669 = vlaneseq
    %v670 = vshrl.u32 %v669, 7
    %v671 = vsub.s32 0, %v670
    %v672 = vrot.slane %v523, %v671
    %v673 = vadd.f32 %v668, %v672
    %v674 = vmul.f32 %v673, 0.2
    %v675 = vmax.f32 %v673, %v674
    %v676 = vpack.c.bf16 %v675, %v675
    %v677 = vlaneseq
    %v678 = vshrl.u32 %v677, 7
    %v679 = vsub.s32 0, %v678
    %v680 = vrot.slane %v524, %v679
    %v697 = vunpack.c.l.b16 %v541
    %v698 = vunpack.c.l.b16 %v542
    %v699 = vunpack.c.l.b16 %v543
    %v700 = vunpack.c.l.b16 %v544
    %v701 = vunpack.c.l.b16 %v545
    %v702 = vunpack.c.l.b16 %v546
    %v703 = vunpack.c.l.b16 %v547
    %v704 = vunpack.c.l.b16 %v548
    %v705 = vunpack.c.l.b16 %v549
    %v706 = vunpack.c.l.b16 %v550
    %v707 = vunpack.c.l.b16 %v551
    %v708 = vunpack.c.l.b16 %v552
    %v709 = vunpack.c.l.b16 %v553
    %v710 = vunpack.c.l.b16 %v554
    %v711 = vunpack.c.l.b16 %v555
    %v712 = vunpack.c.l.b16 %v556
    %v713 = vpack.c.b16 %v698, %v697
    %v714 = vpack.c.b16 %v700, %v699
    %v715 = vpack.c.b16 %v702, %v701
    %v716 = vpack.c.b16 %v704, %v703
    %v717 = vpack.c.b16 %v706, %v705
    %v718 = vpack.c.b16 %v708, %v707
    %v719 = vpack.c.b16 %v710, %v709
    %v720 = vpack.c.b16 %v712, %v711
    %729 = vmatprep.subr.bf16.mxu0 0
    %730 = vmatpush1.bf16.msra.mxu0 %v713
    %731 = vmatprep.subr.bf16.mxu0 0
    %732 = vmatpush1.bf16.msra.mxu0 %v714
    %733 = vmatprep.subr.bf16.mxu0 0
    %734 = vmatpush1.bf16.msra.mxu0 %v715
    %735 = vmatprep.subr.bf16.mxu0 0
    %736 = vmatpush1.bf16.msra.mxu0 %v716
    %737 = vmatprep.subr.bf16.mxu0 0
    %738 = vmatpush1.bf16.msra.mxu0 %v717
    %739 = vmatprep.subr.bf16.mxu0 0
    %740 = vmatpush1.bf16.msra.mxu0 %v718
    %741 = vmatprep.subr.bf16.mxu0 0
    %742 = vmatpush1.bf16.msra.mxu0 %v719
    %743 = vmatprep.subr.bf16.mxu0 0
    %744 = vmatpush1.bf16.msra.mxu0 %v720
    %745 = vmatprep.subr.bf16.mxu0 0
    %746 = vmatpush1.bf16.msra.mxu0 0
    %747 = vmatprep.subr.bf16.mxu0 0
    %748 = vmatpush1.bf16.msra.mxu0 0
    %749 = vmatprep.subr.bf16.mxu0 0
    %750 = vmatpush1.bf16.msra.mxu0 0
    %751 = vmatprep.subr.bf16.mxu0 0
    %752 = vmatpush1.bf16.msra.mxu0 0
    %753 = vmatprep.subr.bf16.mxu0 0
    %754 = vmatpush1.bf16.msra.mxu0 0
    %755 = vmatprep.subr.bf16.mxu0 0
    %756 = vmatpush1.bf16.msra.mxu0 0
    %757 = vmatprep.subr.bf16.mxu0 0
    %758 = vmatpush1.bf16.msra.mxu0 0
    %759 = vmatprep.subr.bf16.mxu0 0
    %760 = vmatpush1.bf16.msra.mxu0 0
    %761 = vmatprep.mubr.bf16.mxu0 0
    %762 = vmatmul.mubr.bf16.gmra.mrb[0].mxu0 %v676
    %v763 = vpop.f32.mrb[0].mxu0
    %v764 = vadd.f32 %v680, %v763
    %v765 = vpop.f32.mrb[0].mxu0
    %v766 = vpop.f32.mrb[0].mxu0
    %v767 = vpop.f32.mrb[0].mxu0
    %768 = vdwg.mxu0
    %v769 = vtanh.pop %v764
    %770 = vst [vmem:[%s3] sm:$0xff] %v769
    // Predicated region
    $region22: #{generator_forward.1} parent=1 // pred_check
      _
    $region23: #{generator_forward.1} parent=1 // pred_check_branch
      %772 = sbr.rel (0) target = $region25
    $region24: #{generator_forward.1} parent=1 // pred_region
      _
    $region25: #{generator_forward.1} parent=1 // pred_fallthru
      _
    // Predicated region
    $region26: #{generator_forward.1} parent=1 // pred_check
      _
    $region27: #{generator_forward.1} parent=1 // pred_check_branch
      %774 = sbr.rel (0) target = $region29
    $region28: #{generator_forward.1} parent=1 // pred_region
      _
    $region29: #{generator_forward.1} parent=1 // pred_fallthru
      _
    %775 = vsyncpa [#allocation3], 1
    %776 = vsyncpa [#allocation5], 1

</llo_original>
